<compile_context>
chip_gen: v6e
topology: v6e:2x2x1
jax: 0.10.0
libtpu: 0.0.40
codegen_flags: <defaults>
</compile_context>

<pallas_src>
import functools

import jax
import jax.numpy as jnp
from jax import lax
from jax.experimental import pallas as pl
from jax.experimental.pallas import tpu as pltpu


def _round_up(x, m):
    return ((x + m - 1) // m) * m


def _sublane_multiple(dtype):
    itemsize = jnp.dtype(dtype).itemsize
    if itemsize >= 4:
        return 8
    if itemsize == 2:
        return 16
    return 32


def _embedding_gather_kernel(idx_ref, emb_ref, out_ref, *,
                             num_chars, emb_dim, tb, idx_is_blocked, unroll):
    """
    idx_ref: SMEM int32 indices, pre-clamped in the wrapper.
               blocked:  [tb * num_chars]        (this batch tile only)
               prefetch: [bs_pad * num_chars]    (fallback: whole batch)
    emb_ref: VMEM [vocab, emb_dim]  (constant index_map -> resident across grid)
    out_ref: VMEM [tb, num_chars * emb_dim]  (lane-dense fused output tile)
    """
    if idx_is_blocked:
        base_off = 0
    else:
        base_off = pl.program_id(0) * (tb * num_chars)

    def row_body(r, carry):
        row_off = base_off + r * num_chars
        for c in range(num_chars):                       # static unroll: num_chars is small
            k = idx_ref[row_off + c]                     # SMEM scalar read (scalar path)
            # Direct dynamic-slice store: no in-register tile assembly.
            out_ref[pl.ds(r, 1), pl.ds(c * emb_dim, emb_dim)] = emb_ref[pl.ds(k, 1), :]
        return carry

    lax.fori_loop(0, tb, row_body, None, unroll=unroll)


def static_variables_embedding(static_input, embedding_weight, *, block_rows=None):
    """
    static_input:     int array [bs, num_characters]
    embedding_weight: float array [static_variables(vocab), embedding_dim]
    returns:          float array [bs, num_characters * embedding_dim]
    """
    bs, num_chars = static_input.shape
    vocab, emb_dim = embedding_weight.shape
    out_dtype = embedding_weight.dtype
    itemsize = jnp.dtype(out_dtype).itemsize
    out_width = num_chars * emb_dim            # .view() semantics (num_chars == static_variables)

    # dtype-aware sublane multiple (f32: 8, bf16: 16, int8/fp8: 32)
    sub = _sublane_multiple(out_dtype)

    # Batch tile: big enough to amortize per-grid-step overhead, capped so the
    # grid has >= 2 steps when bs allows (keeps both v7x TensorCores busy).
    target_tb = _round_up(int(block_rows), sub) if block_rows is not None else max(128, sub)
    half = _round_up(max(1, (bs + 1) // 2), sub)
    tb = max(sub, min(target_tb, half))
    bs_pad = _round_up(bs, tb)
    grid = (bs_pad // tb,)

    # One vectorized clamp in the wrapper (torch raises on OOB; we clamp).
    idx = jnp.clip(static_input.astype(jnp.int32), 0, vocab - 1)
    if bs_pad != bs:
        idx = jnp.pad(idx, ((0, bs_pad - bs), (0, 0)))   # pad rows use index 0 (valid)
    idx_flat = idx.reshape(-1)                            # 1-D: SMEM-friendly layout

    unroll = 8 if tb % 8 == 0 else 1

    cost = pl.CostEstimate(
        flops=0,
        transcendentals=0,
        bytes_accessed=int(idx_flat.size * 4
                           + vocab * emb_dim * itemsize
                           + bs_pad * out_width * itemsize),
    )

    def _vmem_limit(table_buffers):
        # Padded, buffered VMEM footprint (emb_dim lane-pads to 128).
        table_vmem = (_round_up(vocab, sub) * _round_up(emb_dim, 128)
                      * itemsize * table_buffers)
        out_vmem = tb * _round_up(out_width, 128) * itemsize * 2   # double-buffered out
        return int(max(table_vmem + out_vmem + (1 << 20), 4 << 20))

    out_shape = jax.ShapeDtypeStruct((bs_pad, out_width), out_dtype)

    def _build(idx_is_blocked, single_buffer_table):
        kernel = functools.partial(
            _embedding_gather_kernel,
            num_chars=num_chars, emb_dim=emb_dim, tb=tb,
            idx_is_blocked=idx_is_blocked, unroll=unroll)

        table_kwargs = {}
        if single_buffer_table:
            table_kwargs["pipeline_mode"] = pl.Buffered(1)
        n_buf = 1 if single_buffer_table else 2

        params = pltpu.CompilerParams(
            dimension_semantics=("parallel",),
            vmem_limit_bytes=_vmem_limit(n_buf),
        )

        if idx_is_blocked:
            grid_spec = pltpu.PrefetchScalarGridSpec(
                num_scalar_prefetch=0,
                grid=grid,
                in_specs=[
                    # Per-tile indices in SMEM: bounded SMEM, pipelined with grid.
                    pl.BlockSpec((tb * num_chars,), lambda i: (i,),
                                 memory_space=pltpu.SMEM),
                    # Full table, constant index_map -> DMA'd once, stays resident.
                    pl.BlockSpec((vocab, emb_dim), lambda i: (0, 0), **table_kwargs),
                ],
                out_specs=pl.BlockSpec((tb, out_width), lambda i: (i, 0)),
            )
        else:
            # Conservative fallback: whole index array scalar-prefetched to SMEM.
            grid_spec = pltpu.PrefetchScalarGridSpec(
                num_scalar_prefetch=1,
                grid=grid,
                in_specs=[
                    pl.BlockSpec((vocab, emb_dim), lambda i, idx_r: (0, 0),
                                 **table_kwargs),
                ],
                out_specs=pl.BlockSpec((tb, out_width), lambda i, idx_r: (i, 0)),
            )

        return pl.pallas_call(
            kernel,
            out_shape=out_shape,
            grid_spec=grid_spec,
            compiler_params=params,
            cost_estimate=cost,
        )

    # Preferred config first; fall back to the previously verified scheme if the
    # lowering rejects blocked-SMEM indices or single-buffered table.
    configs = (
        dict(idx_is_blocked=True, single_buffer_table=True),
        dict(idx_is_blocked=True, single_buffer_table=False),
        dict(idx_is_blocked=False, single_buffer_table=False),
    )
    out_padded = None
    last_err = None
    for cfg in configs:
        try:
            out_padded = _build(**cfg)(idx_flat, embedding_weight)
            break
        except Exception as e:   # lowering / compile rejection -> next config
            last_err = e
    if out_padded is None:
        raise last_err

    if bs_pad == bs:
        return out_padded          # avoid the extra slice copy when possible
    return out_padded[:bs]


if __name__ == "__main__":
    # Small deterministic example consistent with the module:
    #   static_variables = num_characters = 4, embedding_dim = 32, batch = 2
    static_variables = 4
    embedding_dim = 32
    batch = 2

    key = jax.random.PRNGKey(0)
    k_emb, k_idx = jax.random.split(key)

    # nn.Embedding default init: weight ~ N(0, 1), shape [static_variables, embedding_dim]
    embedding_weight = jax.random.normal(
        k_emb, (static_variables, embedding_dim), dtype=jnp.float32
    )

    # Long-type input [bs, num_characters] with values in [0, static_variables)
    static_input = jax.random.randint(
        k_idx, (batch, static_variables), 0, static_variables, dtype=jnp.int32
    )

    out = static_variables_embedding(static_input, embedding_weight)
    out = jax.block_until_ready(out)

    # Pure-JAX reference (embedding lookup + flatten).
    ref = jnp.take(embedding_weight, static_input, axis=0).reshape(
        batch, static_variables * embedding_dim
    )
    assert out.shape == (batch, static_variables * embedding_dim), out.shape
    assert jnp.allclose(out, ref, atol=1e-6), "mismatch vs reference"

    print("KERNEL_OK")
</pallas_src>

<mosaic_0001>
module attributes {stable_mosaic.version = 11 : i64} {
  func.func @_embedding_gather_kernel(%arg0: i32, %arg1: memref<32xi32, #tpu.memory_space<smem>>, %arg2: memref<4x32xf32, #tpu.memory_space<vmem>>, %arg3: memref<8x128xf32, #tpu.memory_space<vmem>>) attributes {dimension_semantics = [#tpu.dimension_semantics<parallel>], iteration_bounds = array<i64: 1>, scalar_prefetch = 1 : i64, scratch_operands = 0 : i64, tpu.core_type = #tpu.core_type<tc>, window_params = [{pipeline_mode = #tpu.pipeline_mode<synchronous>, transform_indices = @transform_0, window_bounds = array<i64: 4, 32>}, {transform_indices = @transform_1, window_bounds = array<i64: 8, 128>}]} {
    %c32_i32 = arith.constant 32 : i32
    %0 = arith.muli %arg0, %c32_i32 : i32
    %c0_i32 = arith.constant 0 : i32
    %c4_i32 = arith.constant 4 : i32
    %1 = arith.muli %c0_i32, %c4_i32 : i32
    %2 = arith.addi %0, %1 : i32
    %c0_i32_0 = arith.constant 0 : i32
    %3 = arith.addi %2, %c0_i32_0 : i32
    %4 = arith.index_cast %3 : i32 to index
    %5 = memref.load %arg1[%4] : memref<32xi32, #tpu.memory_space<smem>>
    %6 = arith.index_cast %5 : i32 to index
    %c0 = arith.constant 0 : index
    %7 = vector.load %arg2[%6, %c0] : memref<4x32xf32, #tpu.memory_space<vmem>>, vector<1x32xf32>
    %8 = arith.index_cast %c0_i32 : i32 to index
    %c0_1 = arith.constant 0 : index
    %9 = vector.load %arg3[%8, %c0_1] : memref<8x128xf32, #tpu.memory_space<vmem>>, vector<1x32xf32>
    tpu.vector_store %arg3[%8, %c0_1], %7 {strides = array<i32>} : memref<8x128xf32, #tpu.memory_space<vmem>>, vector<1x32xf32>,
    %c1_i32 = arith.constant 1 : i32
    %10 = arith.addi %2, %c1_i32 : i32
    %11 = arith.index_cast %10 : i32 to index
    %12 = memref.load %arg1[%11] : memref<32xi32, #tpu.memory_space<smem>>
    %13 = arith.index_cast %12 : i32 to index
    %c0_2 = arith.constant 0 : index
    %14 = vector.load %arg2[%13, %c0_2] : memref<4x32xf32, #tpu.memory_space<vmem>>, vector<1x32xf32>
    %15 = arith.index_cast %c0_i32 : i32 to index
    %c32 = arith.constant 32 : index
    %16 = vector.load %arg3[%15, %c32] : memref<8x128xf32, #tpu.memory_space<vmem>>, vector<1x32xf32>
    tpu.vector_store %arg3[%15, %c32], %14 {strides = array<i32>} : memref<8x128xf32, #tpu.memory_space<vmem>>, vector<1x32xf32>,
    %c2_i32 = arith.constant 2 : i32
    %17 = arith.addi %2, %c2_i32 : i32
    %18 = arith.index_cast %17 : i32 to index
    %19 = memref.load %arg1[%18] : memref<32xi32, #tpu.memory_space<smem>>
    %20 = arith.index_cast %19 : i32 to index
    %c0_3 = arith.constant 0 : index
    %21 = vector.load %arg2[%20, %c0_3] : memref<4x32xf32, #tpu.memory_space<vmem>>, vector<1x32xf32>
    %22 = arith.index_cast %c0_i32 : i32 to index
    %c64 = arith.constant 64 : index
    %23 = vector.load %arg3[%22, %c64] : memref<8x128xf32, #tpu.memory_space<vmem>>, vector<1x32xf32>
    tpu.vector_store %arg3[%22, %c64], %21 {strides = array<i32>} : memref<8x128xf32, #tpu.memory_space<vmem>>, vector<1x32xf32>,
    %c3_i32 = arith.constant 3 : i32
    %24 = arith.addi %2, %c3_i32 : i32
    %25 = arith.index_cast %24 : i32 to index
    %26 = memref.load %arg1[%25] : memref<32xi32, #tpu.memory_space<smem>>
    %27 = arith.index_cast %26 : i32 to index
    %c0_4 = arith.constant 0 : index
    %28 = vector.load %arg2[%27, %c0_4] : memref<4x32xf32, #tpu.memory_space<vmem>>, vector<1x32xf32>
    %29 = arith.index_cast %c0_i32 : i32 to index
    %c96 = arith.constant 96 : index
    %30 = vector.load %arg3[%29, %c96] : memref<8x128xf32, #tpu.memory_space<vmem>>, vector<1x32xf32>
    tpu.vector_store %arg3[%29, %c96], %28 {strides = array<i32>} : memref<8x128xf32, #tpu.memory_space<vmem>>, vector<1x32xf32>,
    %c1_i32_5 = arith.constant 1 : i32
    %c4_i32_6 = arith.constant 4 : i32
    %31 = arith.muli %c1_i32_5, %c4_i32_6 : i32
    %32 = arith.addi %0, %31 : i32
    %c0_i32_7 = arith.constant 0 : i32
    %33 = arith.addi %32, %c0_i32_7 : i32
    %34 = arith.index_cast %33 : i32 to index
    %35 = memref.load %arg1[%34] : memref<32xi32, #tpu.memory_space<smem>>
    %36 = arith.index_cast %35 : i32 to index
    %c0_8 = arith.constant 0 : index
    %37 = vector.load %arg2[%36, %c0_8] : memref<4x32xf32, #tpu.memory_space<vmem>>, vector<1x32xf32>
    %38 = arith.index_cast %c1_i32_5 : i32 to index
    %c0_9 = arith.constant 0 : index
    %39 = vector.load %arg3[%38, %c0_9] : memref<8x128xf32, #tpu.memory_space<vmem>>, vector<1x32xf32>
    tpu.vector_store %arg3[%38, %c0_9], %37 {strides = array<i32>} : memref<8x128xf32, #tpu.memory_space<vmem>>, vector<1x32xf32>,
    %c1_i32_10 = arith.constant 1 : i32
    %40 = arith.addi %32, %c1_i32_10 : i32
    %41 = arith.index_cast %40 : i32 to index
    %42 = memref.load %arg1[%41] : memref<32xi32, #tpu.memory_space<smem>>
    %43 = arith.index_cast %42 : i32 to index
    %c0_11 = arith.constant 0 : index
    %44 = vector.load %arg2[%43, %c0_11] : memref<4x32xf32, #tpu.memory_space<vmem>>, vector<1x32xf32>
    %45 = arith.index_cast %c1_i32_5 : i32 to index
    %c32_12 = arith.constant 32 : index
    %46 = vector.load %arg3[%45, %c32_12] : memref<8x128xf32, #tpu.memory_space<vmem>>, vector<1x32xf32>
    tpu.vector_store %arg3[%45, %c32_12], %44 {strides = array<i32>} : memref<8x128xf32, #tpu.memory_space<vmem>>, vector<1x32xf32>,
    %c2_i32_13 = arith.constant 2 : i32
    %47 = arith.addi %32, %c2_i32_13 : i32
    %48 = arith.index_cast %47 : i32 to index
    %49 = memref.load %arg1[%48] : memref<32xi32, #tpu.memory_space<smem>>
    %50 = arith.index_cast %49 : i32 to index
    %c0_14 = arith.constant 0 : index
    %51 = vector.load %arg2[%50, %c0_14] : memref<4x32xf32, #tpu.memory_space<vmem>>, vector<1x32xf32>
    %52 = arith.index_cast %c1_i32_5 : i32 to index
    %c64_15 = arith.constant 64 : index
    %53 = vector.load %arg3[%52, %c64_15] : memref<8x128xf32, #tpu.memory_space<vmem>>, vector<1x32xf32>
    tpu.vector_store %arg3[%52, %c64_15], %51 {strides = array<i32>} : memref<8x128xf32, #tpu.memory_space<vmem>>, vector<1x32xf32>,
    %c3_i32_16 = arith.constant 3 : i32
    %54 = arith.addi %32, %c3_i32_16 : i32
    %55 = arith.index_cast %54 : i32 to index
    %56 = memref.load %arg1[%55] : memref<32xi32, #tpu.memory_space<smem>>
    %57 = arith.index_cast %56 : i32 to index
    %c0_17 = arith.constant 0 : index
    %58 = vector.load %arg2[%57, %c0_17] : memref<4x32xf32, #tpu.memory_space<vmem>>, vector<1x32xf32>
    %59 = arith.index_cast %c1_i32_5 : i32 to index
    %c96_18 = arith.constant 96 : index
    %60 = vector.load %arg3[%59, %c96_18] : memref<8x128xf32, #tpu.memory_space<vmem>>, vector<1x32xf32>
    tpu.vector_store %arg3[%59, %c96_18], %58 {strides = array<i32>} : memref<8x128xf32, #tpu.memory_space<vmem>>, vector<1x32xf32>,
    %c2_i32_19 = arith.constant 2 : i32
    %c4_i32_20 = arith.constant 4 : i32
    %61 = arith.muli %c2_i32_19, %c4_i32_20 : i32
    %62 = arith.addi %0, %61 : i32
    %c0_i32_21 = arith.constant 0 : i32
    %63 = arith.addi %62, %c0_i32_21 : i32
    %64 = arith.index_cast %63 : i32 to index
    %65 = memref.load %arg1[%64] : memref<32xi32, #tpu.memory_space<smem>>
    %66 = arith.index_cast %65 : i32 to index
    %c0_22 = arith.constant 0 : index
    %67 = vector.load %arg2[%66, %c0_22] : memref<4x32xf32, #tpu.memory_space<vmem>>, vector<1x32xf32>
    %68 = arith.index_cast %c2_i32_19 : i32 to index
    %c0_23 = arith.constant 0 : index
    %69 = vector.load %arg3[%68, %c0_23] : memref<8x128xf32, #tpu.memory_space<vmem>>, vector<1x32xf32>
    tpu.vector_store %arg3[%68, %c0_23], %67 {strides = array<i32>} : memref<8x128xf32, #tpu.memory_space<vmem>>, vector<1x32xf32>,
    %c1_i32_24 = arith.constant 1 : i32
    %70 = arith.addi %62, %c1_i32_24 : i32
    %71 = arith.index_cast %70 : i32 to index
    %72 = memref.load %arg1[%71] : memref<32xi32, #tpu.memory_space<smem>>
    %73 = arith.index_cast %72 : i32 to index
    %c0_25 = arith.constant 0 : index
    %74 = vector.load %arg2[%73, %c0_25] : memref<4x32xf32, #tpu.memory_space<vmem>>, vector<1x32xf32>
    %75 = arith.index_cast %c2_i32_19 : i32 to index
    %c32_26 = arith.constant 32 : index
    %76 = vector.load %arg3[%75, %c32_26] : memref<8x128xf32, #tpu.memory_space<vmem>>, vector<1x32xf32>
    tpu.vector_store %arg3[%75, %c32_26], %74 {strides = array<i32>} : memref<8x128xf32, #tpu.memory_space<vmem>>, vector<1x32xf32>,
    %c2_i32_27 = arith.constant 2 : i32
    %77 = arith.addi %62, %c2_i32_27 : i32
    %78 = arith.index_cast %77 : i32 to index
    %79 = memref.load %arg1[%78] : memref<32xi32, #tpu.memory_space<smem>>
    %80 = arith.index_cast %79 : i32 to index
    %c0_28 = arith.constant 0 : index
    %81 = vector.load %arg2[%80, %c0_28] : memref<4x32xf32, #tpu.memory_space<vmem>>, vector<1x32xf32>
    %82 = arith.index_cast %c2_i32_19 : i32 to index
    %c64_29 = arith.constant 64 : index
    %83 = vector.load %arg3[%82, %c64_29] : memref<8x128xf32, #tpu.memory_space<vmem>>, vector<1x32xf32>
    tpu.vector_store %arg3[%82, %c64_29], %81 {strides = array<i32>} : memref<8x128xf32, #tpu.memory_space<vmem>>, vector<1x32xf32>,
    %c3_i32_30 = arith.constant 3 : i32
    %84 = arith.addi %62, %c3_i32_30 : i32
    %85 = arith.index_cast %84 : i32 to index
    %86 = memref.load %arg1[%85] : memref<32xi32, #tpu.memory_space<smem>>
    %87 = arith.index_cast %86 : i32 to index
    %c0_31 = arith.constant 0 : index
    %88 = vector.load %arg2[%87, %c0_31] : memref<4x32xf32, #tpu.memory_space<vmem>>, vector<1x32xf32>
    %89 = arith.index_cast %c2_i32_19 : i32 to index
    %c96_32 = arith.constant 96 : index
    %90 = vector.load %arg3[%89, %c96_32] : memref<8x128xf32, #tpu.memory_space<vmem>>, vector<1x32xf32>
    tpu.vector_store %arg3[%89, %c96_32], %88 {strides = array<i32>} : memref<8x128xf32, #tpu.memory_space<vmem>>, vector<1x32xf32>,
    %c3_i32_33 = arith.constant 3 : i32
    %c4_i32_34 = arith.constant 4 : i32
    %91 = arith.muli %c3_i32_33, %c4_i32_34 : i32
    %92 = arith.addi %0, %91 : i32
    %c0_i32_35 = arith.constant 0 : i32
    %93 = arith.addi %92, %c0_i32_35 : i32
    %94 = arith.index_cast %93 : i32 to index
    %95 = memref.load %arg1[%94] : memref<32xi32, #tpu.memory_space<smem>>
    %96 = arith.index_cast %95 : i32 to index
    %c0_36 = arith.constant 0 : index
    %97 = vector.load %arg2[%96, %c0_36] : memref<4x32xf32, #tpu.memory_space<vmem>>, vector<1x32xf32>
    %98 = arith.index_cast %c3_i32_33 : i32 to index
    %c0_37 = arith.constant 0 : index
    %99 = vector.load %arg3[%98, %c0_37] : memref<8x128xf32, #tpu.memory_space<vmem>>, vector<1x32xf32>
    tpu.vector_store %arg3[%98, %c0_37], %97 {strides = array<i32>} : memref<8x128xf32, #tpu.memory_space<vmem>>, vector<1x32xf32>,
    %c1_i32_38 = arith.constant 1 : i32
    %100 = arith.addi %92, %c1_i32_38 : i32
    %101 = arith.index_cast %100 : i32 to index
    %102 = memref.load %arg1[%101] : memref<32xi32, #tpu.memory_space<smem>>
    %103 = arith.index_cast %102 : i32 to index
    %c0_39 = arith.constant 0 : index
    %104 = vector.load %arg2[%103, %c0_39] : memref<4x32xf32, #tpu.memory_space<vmem>>, vector<1x32xf32>
    %105 = arith.index_cast %c3_i32_33 : i32 to index
    %c32_40 = arith.constant 32 : index
    %106 = vector.load %arg3[%105, %c32_40] : memref<8x128xf32, #tpu.memory_space<vmem>>, vector<1x32xf32>
    tpu.vector_store %arg3[%105, %c32_40], %104 {strides = array<i32>} : memref<8x128xf32, #tpu.memory_space<vmem>>, vector<1x32xf32>,
    %c2_i32_41 = arith.constant 2 : i32
    %107 = arith.addi %92, %c2_i32_41 : i32
    %108 = arith.index_cast %107 : i32 to index
    %109 = memref.load %arg1[%108] : memref<32xi32, #tpu.memory_space<smem>>
    %110 = arith.index_cast %109 : i32 to index
    %c0_42 = arith.constant 0 : index
    %111 = vector.load %arg2[%110, %c0_42] : memref<4x32xf32, #tpu.memory_space<vmem>>, vector<1x32xf32>
    %112 = arith.index_cast %c3_i32_33 : i32 to index
    %c64_43 = arith.constant 64 : index
    %113 = vector.load %arg3[%112, %c64_43] : memref<8x128xf32, #tpu.memory_space<vmem>>, vector<1x32xf32>
    tpu.vector_store %arg3[%112, %c64_43], %111 {strides = array<i32>} : memref<8x128xf32, #tpu.memory_space<vmem>>, vector<1x32xf32>,
    %c3_i32_44 = arith.constant 3 : i32
    %114 = arith.addi %92, %c3_i32_44 : i32
    %115 = arith.index_cast %114 : i32 to index
    %116 = memref.load %arg1[%115] : memref<32xi32, #tpu.memory_space<smem>>
    %117 = arith.index_cast %116 : i32 to index
    %c0_45 = arith.constant 0 : index
    %118 = vector.load %arg2[%117, %c0_45] : memref<4x32xf32, #tpu.memory_space<vmem>>, vector<1x32xf32>
    %119 = arith.index_cast %c3_i32_33 : i32 to index
    %c96_46 = arith.constant 96 : index
    %120 = vector.load %arg3[%119, %c96_46] : memref<8x128xf32, #tpu.memory_space<vmem>>, vector<1x32xf32>
    tpu.vector_store %arg3[%119, %c96_46], %118 {strides = array<i32>} : memref<8x128xf32, #tpu.memory_space<vmem>>, vector<1x32xf32>,
    %c4_i32_47 = arith.constant 4 : i32
    %c4_i32_48 = arith.constant 4 : i32
    %121 = arith.muli %c4_i32_47, %c4_i32_48 : i32
    %122 = arith.addi %0, %121 : i32
    %c0_i32_49 = arith.constant 0 : i32
    %123 = arith.addi %122, %c0_i32_49 : i32
    %124 = arith.index_cast %123 : i32 to index
    %125 = memref.load %arg1[%124] : memref<32xi32, #tpu.memory_space<smem>>
    %126 = arith.index_cast %125 : i32 to index
    %c0_50 = arith.constant 0 : index
    %127 = vector.load %arg2[%126, %c0_50] : memref<4x32xf32, #tpu.memory_space<vmem>>, vector<1x32xf32>
    %128 = arith.index_cast %c4_i32_47 : i32 to index
    %c0_51 = arith.constant 0 : index
    %129 = vector.load %arg3[%128, %c0_51] : memref<8x128xf32, #tpu.memory_space<vmem>>, vector<1x32xf32>
    tpu.vector_store %arg3[%128, %c0_51], %127 {strides = array<i32>} : memref<8x128xf32, #tpu.memory_space<vmem>>, vector<1x32xf32>,
    %c1_i32_52 = arith.constant 1 : i32
    %130 = arith.addi %122, %c1_i32_52 : i32
    %131 = arith.index_cast %130 : i32 to index
    %132 = memref.load %arg1[%131] : memref<32xi32, #tpu.memory_space<smem>>
    %133 = arith.index_cast %132 : i32 to index
    %c0_53 = arith.constant 0 : index
    %134 = vector.load %arg2[%133, %c0_53] : memref<4x32xf32, #tpu.memory_space<vmem>>, vector<1x32xf32>
    %135 = arith.index_cast %c4_i32_47 : i32 to index
    %c32_54 = arith.constant 32 : index
    %136 = vector.load %arg3[%135, %c32_54] : memref<8x128xf32, #tpu.memory_space<vmem>>, vector<1x32xf32>
    tpu.vector_store %arg3[%135, %c32_54], %134 {strides = array<i32>} : memref<8x128xf32, #tpu.memory_space<vmem>>, vector<1x32xf32>,
    %c2_i32_55 = arith.constant 2 : i32
    %137 = arith.addi %122, %c2_i32_55 : i32
    %138 = arith.index_cast %137 : i32 to index
    %139 = memref.load %arg1[%138] : memref<32xi32, #tpu.memory_space<smem>>
    %140 = arith.index_cast %139 : i32 to index
    %c0_56 = arith.constant 0 : index
    %141 = vector.load %arg2[%140, %c0_56] : memref<4x32xf32, #tpu.memory_space<vmem>>, vector<1x32xf32>
    %142 = arith.index_cast %c4_i32_47 : i32 to index
    %c64_57 = arith.constant 64 : index
    %143 = vector.load %arg3[%142, %c64_57] : memref<8x128xf32, #tpu.memory_space<vmem>>, vector<1x32xf32>
    tpu.vector_store %arg3[%142, %c64_57], %141 {strides = array<i32>} : memref<8x128xf32, #tpu.memory_space<vmem>>, vector<1x32xf32>,
    %c3_i32_58 = arith.constant 3 : i32
    %144 = arith.addi %122, %c3_i32_58 : i32
    %145 = arith.index_cast %144 : i32 to index
    %146 = memref.load %arg1[%145] : memref<32xi32, #tpu.memory_space<smem>>
    %147 = arith.index_cast %146 : i32 to index
    %c0_59 = arith.constant 0 : index
    %148 = vector.load %arg2[%147, %c0_59] : memref<4x32xf32, #tpu.memory_space<vmem>>, vector<1x32xf32>
    %149 = arith.index_cast %c4_i32_47 : i32 to index
    %c96_60 = arith.constant 96 : index
    %150 = vector.load %arg3[%149, %c96_60] : memref<8x128xf32, #tpu.memory_space<vmem>>, vector<1x32xf32>
    tpu.vector_store %arg3[%149, %c96_60], %148 {strides = array<i32>} : memref<8x128xf32, #tpu.memory_space<vmem>>, vector<1x32xf32>,
    %c5_i32 = arith.constant 5 : i32
    %c4_i32_61 = arith.constant 4 : i32
    %151 = arith.muli %c5_i32, %c4_i32_61 : i32
    %152 = arith.addi %0, %151 : i32
    %c0_i32_62 = arith.constant 0 : i32
    %153 = arith.addi %152, %c0_i32_62 : i32
    %154 = arith.index_cast %153 : i32 to index
    %155 = memref.load %arg1[%154] : memref<32xi32, #tpu.memory_space<smem>>
    %156 = arith.index_cast %155 : i32 to index
    %c0_63 = arith.constant 0 : index
    %157 = vector.load %arg2[%156, %c0_63] : memref<4x32xf32, #tpu.memory_space<vmem>>, vector<1x32xf32>
    %158 = arith.index_cast %c5_i32 : i32 to index
    %c0_64 = arith.constant 0 : index
    %159 = vector.load %arg3[%158, %c0_64] : memref<8x128xf32, #tpu.memory_space<vmem>>, vector<1x32xf32>
    tpu.vector_store %arg3[%158, %c0_64], %157 {strides = array<i32>} : memref<8x128xf32, #tpu.memory_space<vmem>>, vector<1x32xf32>,
    %c1_i32_65 = arith.constant 1 : i32
    %160 = arith.addi %152, %c1_i32_65 : i32
    %161 = arith.index_cast %160 : i32 to index
    %162 = memref.load %arg1[%161] : memref<32xi32, #tpu.memory_space<smem>>
    %163 = arith.index_cast %162 : i32 to index
    %c0_66 = arith.constant 0 : index
    %164 = vector.load %arg2[%163, %c0_66] : memref<4x32xf32, #tpu.memory_space<vmem>>, vector<1x32xf32>
    %165 = arith.index_cast %c5_i32 : i32 to index
    %c32_67 = arith.constant 32 : index
    %166 = vector.load %arg3[%165, %c32_67] : memref<8x128xf32, #tpu.memory_space<vmem>>, vector<1x32xf32>
    tpu.vector_store %arg3[%165, %c32_67], %164 {strides = array<i32>} : memref<8x128xf32, #tpu.memory_space<vmem>>, vector<1x32xf32>,
    %c2_i32_68 = arith.constant 2 : i32
    %167 = arith.addi %152, %c2_i32_68 : i32
    %168 = arith.index_cast %167 : i32 to index
    %169 = memref.load %arg1[%168] : memref<32xi32, #tpu.memory_space<smem>>
    %170 = arith.index_cast %169 : i32 to index
    %c0_69 = arith.constant 0 : index
    %171 = vector.load %arg2[%170, %c0_69] : memref<4x32xf32, #tpu.memory_space<vmem>>, vector<1x32xf32>
    %172 = arith.index_cast %c5_i32 : i32 to index
    %c64_70 = arith.constant 64 : index
    %173 = vector.load %arg3[%172, %c64_70] : memref<8x128xf32, #tpu.memory_space<vmem>>, vector<1x32xf32>
    tpu.vector_store %arg3[%172, %c64_70], %171 {strides = array<i32>} : memref<8x128xf32, #tpu.memory_space<vmem>>, vector<1x32xf32>,
    %c3_i32_71 = arith.constant 3 : i32
    %174 = arith.addi %152, %c3_i32_71 : i32
    %175 = arith.index_cast %174 : i32 to index
    %176 = memref.load %arg1[%175] : memref<32xi32, #tpu.memory_space<smem>>
    %177 = arith.index_cast %176 : i32 to index
    %c0_72 = arith.constant 0 : index
    %178 = vector.load %arg2[%177, %c0_72] : memref<4x32xf32, #tpu.memory_space<vmem>>, vector<1x32xf32>
    %179 = arith.index_cast %c5_i32 : i32 to index
    %c96_73 = arith.constant 96 : index
    %180 = vector.load %arg3[%179, %c96_73] : memref<8x128xf32, #tpu.memory_space<vmem>>, vector<1x32xf32>
    tpu.vector_store %arg3[%179, %c96_73], %178 {strides = array<i32>} : memref<8x128xf32, #tpu.memory_space<vmem>>, vector<1x32xf32>,
    %c6_i32 = arith.constant 6 : i32
    %c4_i32_74 = arith.constant 4 : i32
    %181 = arith.muli %c6_i32, %c4_i32_74 : i32
    %182 = arith.addi %0, %181 : i32
    %c0_i32_75 = arith.constant 0 : i32
    %183 = arith.addi %182, %c0_i32_75 : i32
    %184 = arith.index_cast %183 : i32 to index
    %185 = memref.load %arg1[%184] : memref<32xi32, #tpu.memory_space<smem>>
    %186 = arith.index_cast %185 : i32 to index
    %c0_76 = arith.constant 0 : index
    %187 = vector.load %arg2[%186, %c0_76] : memref<4x32xf32, #tpu.memory_space<vmem>>, vector<1x32xf32>
    %188 = arith.index_cast %c6_i32 : i32 to index
    %c0_77 = arith.constant 0 : index
    %189 = vector.load %arg3[%188, %c0_77] : memref<8x128xf32, #tpu.memory_space<vmem>>, vector<1x32xf32>
    tpu.vector_store %arg3[%188, %c0_77], %187 {strides = array<i32>} : memref<8x128xf32, #tpu.memory_space<vmem>>, vector<1x32xf32>,
    %c1_i32_78 = arith.constant 1 : i32
    %190 = arith.addi %182, %c1_i32_78 : i32
    %191 = arith.index_cast %190 : i32 to index
    %192 = memref.load %arg1[%191] : memref<32xi32, #tpu.memory_space<smem>>
    %193 = arith.index_cast %192 : i32 to index
    %c0_79 = arith.constant 0 : index
    %194 = vector.load %arg2[%193, %c0_79] : memref<4x32xf32, #tpu.memory_space<vmem>>, vector<1x32xf32>
    %195 = arith.index_cast %c6_i32 : i32 to index
    %c32_80 = arith.constant 32 : index
    %196 = vector.load %arg3[%195, %c32_80] : memref<8x128xf32, #tpu.memory_space<vmem>>, vector<1x32xf32>
    tpu.vector_store %arg3[%195, %c32_80], %194 {strides = array<i32>} : memref<8x128xf32, #tpu.memory_space<vmem>>, vector<1x32xf32>,
    %c2_i32_81 = arith.constant 2 : i32
    %197 = arith.addi %182, %c2_i32_81 : i32
    %198 = arith.index_cast %197 : i32 to index
    %199 = memref.load %arg1[%198] : memref<32xi32, #tpu.memory_space<smem>>
    %200 = arith.index_cast %199 : i32 to index
    %c0_82 = arith.constant 0 : index
    %201 = vector.load %arg2[%200, %c0_82] : memref<4x32xf32, #tpu.memory_space<vmem>>, vector<1x32xf32>
    %202 = arith.index_cast %c6_i32 : i32 to index
    %c64_83 = arith.constant 64 : index
    %203 = vector.load %arg3[%202, %c64_83] : memref<8x128xf32, #tpu.memory_space<vmem>>, vector<1x32xf32>
    tpu.vector_store %arg3[%202, %c64_83], %201 {strides = array<i32>} : memref<8x128xf32, #tpu.memory_space<vmem>>, vector<1x32xf32>,
    %c3_i32_84 = arith.constant 3 : i32
    %204 = arith.addi %182, %c3_i32_84 : i32
    %205 = arith.index_cast %204 : i32 to index
    %206 = memref.load %arg1[%205] : memref<32xi32, #tpu.memory_space<smem>>
    %207 = arith.index_cast %206 : i32 to index
    %c0_85 = arith.constant 0 : index
    %208 = vector.load %arg2[%207, %c0_85] : memref<4x32xf32, #tpu.memory_space<vmem>>, vector<1x32xf32>
    %209 = arith.index_cast %c6_i32 : i32 to index
    %c96_86 = arith.constant 96 : index
    %210 = vector.load %arg3[%209, %c96_86] : memref<8x128xf32, #tpu.memory_space<vmem>>, vector<1x32xf32>
    tpu.vector_store %arg3[%209, %c96_86], %208 {strides = array<i32>} : memref<8x128xf32, #tpu.memory_space<vmem>>, vector<1x32xf32>,
    %c7_i32 = arith.constant 7 : i32
    %c4_i32_87 = arith.constant 4 : i32
    %211 = arith.muli %c7_i32, %c4_i32_87 : i32
    %212 = arith.addi %0, %211 : i32
    %c0_i32_88 = arith.constant 0 : i32
    %213 = arith.addi %212, %c0_i32_88 : i32
    %214 = arith.index_cast %213 : i32 to index
    %215 = memref.load %arg1[%214] : memref<32xi32, #tpu.memory_space<smem>>
    %216 = arith.index_cast %215 : i32 to index
    %c0_89 = arith.constant 0 : index
    %217 = vector.load %arg2[%216, %c0_89] : memref<4x32xf32, #tpu.memory_space<vmem>>, vector<1x32xf32>
    %218 = arith.index_cast %c7_i32 : i32 to index
    %c0_90 = arith.constant 0 : index
    %219 = vector.load %arg3[%218, %c0_90] : memref<8x128xf32, #tpu.memory_space<vmem>>, vector<1x32xf32>
    tpu.vector_store %arg3[%218, %c0_90], %217 {strides = array<i32>} : memref<8x128xf32, #tpu.memory_space<vmem>>, vector<1x32xf32>,
    %c1_i32_91 = arith.constant 1 : i32
    %220 = arith.addi %212, %c1_i32_91 : i32
    %221 = arith.index_cast %220 : i32 to index
    %222 = memref.load %arg1[%221] : memref<32xi32, #tpu.memory_space<smem>>
    %223 = arith.index_cast %222 : i32 to index
    %c0_92 = arith.constant 0 : index
    %224 = vector.load %arg2[%223, %c0_92] : memref<4x32xf32, #tpu.memory_space<vmem>>, vector<1x32xf32>
    %225 = arith.index_cast %c7_i32 : i32 to index
    %c32_93 = arith.constant 32 : index
    %226 = vector.load %arg3[%225, %c32_93] : memref<8x128xf32, #tpu.memory_space<vmem>>, vector<1x32xf32>
    tpu.vector_store %arg3[%225, %c32_93], %224 {strides = array<i32>} : memref<8x128xf32, #tpu.memory_space<vmem>>, vector<1x32xf32>,
    %c2_i32_94 = arith.constant 2 : i32
    %227 = arith.addi %212, %c2_i32_94 : i32
    %228 = arith.index_cast %227 : i32 to index
    %229 = memref.load %arg1[%228] : memref<32xi32, #tpu.memory_space<smem>>
    %230 = arith.index_cast %229 : i32 to index
    %c0_95 = arith.constant 0 : index
    %231 = vector.load %arg2[%230, %c0_95] : memref<4x32xf32, #tpu.memory_space<vmem>>, vector<1x32xf32>
    %232 = arith.index_cast %c7_i32 : i32 to index
    %c64_96 = arith.constant 64 : index
    %233 = vector.load %arg3[%232, %c64_96] : memref<8x128xf32, #tpu.memory_space<vmem>>, vector<1x32xf32>
    tpu.vector_store %arg3[%232, %c64_96], %231 {strides = array<i32>} : memref<8x128xf32, #tpu.memory_space<vmem>>, vector<1x32xf32>,
    %c3_i32_97 = arith.constant 3 : i32
    %234 = arith.addi %212, %c3_i32_97 : i32
    %235 = arith.index_cast %234 : i32 to index
    %236 = memref.load %arg1[%235] : memref<32xi32, #tpu.memory_space<smem>>
    %237 = arith.index_cast %236 : i32 to index
    %c0_98 = arith.constant 0 : index
    %238 = vector.load %arg2[%237, %c0_98] : memref<4x32xf32, #tpu.memory_space<vmem>>, vector<1x32xf32>
    %239 = arith.index_cast %c7_i32 : i32 to index
    %c96_99 = arith.constant 96 : index
    %240 = vector.load %arg3[%239, %c96_99] : memref<8x128xf32, #tpu.memory_space<vmem>>, vector<1x32xf32>
    tpu.vector_store %arg3[%239, %c96_99], %238 {strides = array<i32>} : memref<8x128xf32, #tpu.memory_space<vmem>>, vector<1x32xf32>,
    %c8_i32 = arith.constant 8 : i32
    return
  }
  func.func @transform_0(%arg0: i32, %arg1: memref<32xi32, #tpu.memory_space<smem>>) -> (i32, i32) {
    %c0_i32 = arith.constant 0 : i32
    %c0_i32_0 = arith.constant 0 : i32
    %c0_i32_1 = arith.constant 0 : i32
    return %c0_i32, %c0_i32_0 : i32, i32
  }
  func.func @transform_1(%arg0: i32, %arg1: memref<32xi32, #tpu.memory_space<smem>>) -> (i32, i32) {
    %c0_i32 = arith.constant 0 : i32
    %c0_i32_0 = arith.constant 0 : i32
    return %arg0, %c0_i32 : i32, i32
  }
}

</mosaic_0001>

<llo_original>
// kernel: tpu_custom_call.1
$region0: #{tpu_custom_call.1}
  #allocation0 [shape = 'u32[]', space=smem, size = 0x4, offset = 0x4, fixed_abs, tag = 'smem constant byte address 0x4 - core index']
  #allocation1 [shape = 'u32[144,128]{1,0:T(1,128)}', space=vmem, size = 0x12000, scoped, tag = 'internal scratch']
  #allocation2 [shape = 's32[1]{0}', space=sflag, size = 0x4, scoped, tag = 'scoped memory for tpu_custom_call.1']
  #allocation3 [shape = 'u8[512]{0}', space=smem, size = 0x200, scoped, tag = 'prefetched SMEM operand 0']
  %s0 = inlined_call_operand.hbm [shape: s32[32], index: 0, kind: input, shape index: {}]
  %s1 = inlined_call_operand.hbm [shape: f32[4,32], index: 1, kind: input, shape index: {}]
  %s2 = inlined_call_operand.hbm [shape: f32[8,128], index: 2, kind: output, shape index: {}]
  %s3 = sld [smem:[#allocation0]]
  $region18: #{tpu_custom_call.1} parent=0
    _
  %s5 = ssub.s32 1, %s3
  %s6 = scalar_select 0, %s5, %s3
  %8 = dma.hbm_to_smem %s0, 16, [#allocation3], [#allocation2]
  %9 = dma.done [#allocation2], 16
  %10 = sfence
  $region1: #{tpu_custom_call.1} parent=0
    #allocation4 [shape = 'u8[2048]{0}', space=vmem, size = 0x800, scoped, tag = 'input window, operand 1, single buffered']
    #allocation5 [shape = 's32[1]{0}', space=sflag, size = 0x4, scoped, tag = 'scoped memory for tpu_custom_call.1']
    #allocation6 [shape = 's32[1]{0}', space=sflag, size = 0x4, scoped, tag = 'scoped memory for tpu_custom_call.1']
    #allocation7 [shape = 'u8[4096]{0}', space=vmem, size = 0x1000, scoped, tag = 'output window, operand 0, single buffered']
    %11 = vsyncpa [#allocation5], 0
    %12 = vsyncpa [#allocation6], 0
    // Predicated region
    $region2: #{tpu_custom_call.1} parent=1 // pred_check
      _
    $region3: #{tpu_custom_call.1} parent=1 // pred_check_branch
      %14 = sbr.rel (0) target = $region5
    $region4: #{tpu_custom_call.1} parent=1 // pred_region
      %s16 = ssub.s32 64, 64
      %17 = vsyncadd [#allocation5], %s16
      %s19 = sshll.u32 [#allocation4], 4
      %s20 = int_to_ptr.vmem [resolvable:$true] %s19
      %22 = dma.hbm_to_vmem [thread:$0]  %s1, 64, %s20, [#allocation5]
    $region5: #{tpu_custom_call.1} parent=1 // pred_fallthru
      _
    // Predicated region
    $region6: #{tpu_custom_call.1} parent=1 // pred_check
      _
    $region7: #{tpu_custom_call.1} parent=1 // pred_check_branch
      %24 = sbr.rel (0) target = $region9
    $region8: #{tpu_custom_call.1} parent=1 // pred_region
      %25 = dma.done [#allocation5], 64
    $region9: #{tpu_custom_call.1} parent=1 // pred_fallthru
      _
    %s26 = smul.u32 0, 32
    %s27 = sld [smem:[#allocation3 + %s26]]
    %s28 = scalar_lea.vmem [#allocation4], %s27
    %v29 = vld [vmem:[%s28] sm:$0x1]
    %vm30 = vcmask 253952
    %31 = vst.msk [vmem:[#allocation7] sm:$0x1] %vm30, %v29
    %s32 = sadd.s32 %s26, 1
    %s33 = sld [smem:[#allocation3 + %s32]]
    %s34 = scalar_lea.vmem [#allocation4], %s33
    %v35 = vld [vmem:[%s34] sm:$0x1]
    %37 = vrot.lane.b32.xlu0 %v35, 32
    %v38 = vpop.permute.xlu0 %37
    %vm40 = vcmask 516352
    %41 = vst.msk [vmem:[#allocation7] sm:$0x1] %vm40, %v38
    %s42 = sadd.s32 %s26, 2
    %s43 = sld [smem:[#allocation3 + %s42]]
    %s44 = scalar_lea.vmem [#allocation4], %s43
    %v45 = vld [vmem:[%s44] sm:$0x1]
    %47 = vrot.lane.b32.xlu0 %v45, 64
    %v48 = vpop.permute.xlu0 %47
    %vm50 = vcmask 778752
    %51 = vst.msk [vmem:[#allocation7] sm:$0x1] %vm50, %v48
    %s52 = sadd.s32 %s26, 3
    %s53 = sld [smem:[#allocation3 + %s52]]
    %s54 = scalar_lea.vmem [#allocation4], %s53
    %v55 = vld [vmem:[%s54] sm:$0x1]
    %57 = vrot.lane.b32.xlu0 %v55, 96
    %v58 = vpop.permute.xlu0 %57
    %vm60 = vcmask 1041152
    %61 = vst.msk [vmem:[#allocation7] sm:$0x1] %vm60, %v58
    %s62 = sadd.s32 %s26, 4
    %s63 = sld [smem:[#allocation3 + %s62]]
    %s64 = scalar_lea.vmem [#allocation4], %s63
    %v65 = vld [vmem:[%s64] sm:$0x1]
    %66 = vst.msk [vmem:[#allocation7 + $0x1] sm:$0x1] %vm30, %v65
    %s67 = sadd.s32 %s26, 5
    %s68 = sld [smem:[#allocation3 + %s67]]
    %s69 = scalar_lea.vmem [#allocation4], %s68
    %v70 = vld [vmem:[%s69] sm:$0x1]
    %72 = vrot.lane.b32.xlu0 %v70, 32
    %v73 = vpop.permute.xlu0 %72
    %75 = vst.msk [vmem:[#allocation7 + $0x1] sm:$0x1] %vm40, %v73
    %s76 = sadd.s32 %s26, 6
    %s77 = sld [smem:[#allocation3 + %s76]]
    %s78 = scalar_lea.vmem [#allocation4], %s77
    %v79 = vld [vmem:[%s78] sm:$0x1]
    %81 = vrot.lane.b32.xlu0 %v79, 64
    %v82 = vpop.permute.xlu0 %81
    %84 = vst.msk [vmem:[#allocation7 + $0x1] sm:$0x1] %vm50, %v82
    %s85 = sadd.s32 %s26, 7
    %s86 = sld [smem:[#allocation3 + %s85]]
    %s87 = scalar_lea.vmem [#allocation4], %s86
    %v88 = vld [vmem:[%s87] sm:$0x1]
    %90 = vrot.lane.b32.xlu0 %v88, 96
    %v91 = vpop.permute.xlu0 %90
    %93 = vst.msk [vmem:[#allocation7 + $0x1] sm:$0x1] %vm60, %v91
    %s94 = sadd.s32 %s26, 8
    %s95 = sld [smem:[#allocation3 + %s94]]
    %s96 = scalar_lea.vmem [#allocation4], %s95
    %v97 = vld [vmem:[%s96] sm:$0x1]
    %98 = vst.msk [vmem:[#allocation7 + $0x2] sm:$0x1] %vm30, %v97
    %s99 = sadd.s32 %s26, 9
    %s100 = sld [smem:[#allocation3 + %s99]]
    %s101 = scalar_lea.vmem [#allocation4], %s100
    %v102 = vld [vmem:[%s101] sm:$0x1]
    %104 = vrot.lane.b32.xlu0 %v102, 32
    %v105 = vpop.permute.xlu0 %104
    %107 = vst.msk [vmem:[#allocation7 + $0x2] sm:$0x1] %vm40, %v105
    %s108 = sadd.s32 %s26, 10
    %s109 = sld [smem:[#allocation3 + %s108]]
    %s110 = scalar_lea.vmem [#allocation4], %s109
    %v111 = vld [vmem:[%s110] sm:$0x1]
    %113 = vrot.lane.b32.xlu0 %v111, 64
    %v114 = vpop.permute.xlu0 %113
    %116 = vst.msk [vmem:[#allocation7 + $0x2] sm:$0x1] %vm50, %v114
    %s117 = sadd.s32 %s26, 11
    %s118 = sld [smem:[#allocation3 + %s117]]
    %s119 = scalar_lea.vmem [#allocation4], %s118
    %v120 = vld [vmem:[%s119] sm:$0x1]
    %122 = vrot.lane.b32.xlu0 %v120, 96
    %v123 = vpop.permute.xlu0 %122
    %125 = vst.msk [vmem:[#allocation7 + $0x2] sm:$0x1] %vm60, %v123
    %s126 = sadd.s32 %s26, 12
    %s127 = sld [smem:[#allocation3 + %s126]]
    %s128 = scalar_lea.vmem [#allocation4], %s127
    %v129 = vld [vmem:[%s128] sm:$0x1]
    %130 = vst.msk [vmem:[#allocation7 + $0x3] sm:$0x1] %vm30, %v129
    %s131 = sadd.s32 %s26, 13
    %s132 = sld [smem:[#allocation3 + %s131]]
    %s133 = scalar_lea.vmem [#allocation4], %s132
    %v134 = vld [vmem:[%s133] sm:$0x1]
    %136 = vrot.lane.b32.xlu0 %v134, 32
    %v137 = vpop.permute.xlu0 %136
    %139 = vst.msk [vmem:[#allocation7 + $0x3] sm:$0x1] %vm40, %v137
    %s140 = sadd.s32 %s26, 14
    %s141 = sld [smem:[#allocation3 + %s140]]
    %s142 = scalar_lea.vmem [#allocation4], %s141
    %v143 = vld [vmem:[%s142] sm:$0x1]
    %145 = vrot.lane.b32.xlu0 %v143, 64
    %v146 = vpop.permute.xlu0 %145
    %148 = vst.msk [vmem:[#allocation7 + $0x3] sm:$0x1] %vm50, %v146
    %s149 = sadd.s32 %s26, 15
    %s150 = sld [smem:[#allocation3 + %s149]]
    %s151 = scalar_lea.vmem [#allocation4], %s150
    %v152 = vld [vmem:[%s151] sm:$0x1]
    %154 = vrot.lane.b32.xlu0 %v152, 96
    %v155 = vpop.permute.xlu0 %154
    %157 = vst.msk [vmem:[#allocation7 + $0x3] sm:$0x1] %vm60, %v155
    %s158 = sadd.s32 %s26, 16
    %s159 = sld [smem:[#allocation3 + %s158]]
    %s160 = scalar_lea.vmem [#allocation4], %s159
    %v161 = vld [vmem:[%s160] sm:$0x1]
    %162 = vst.msk [vmem:[#allocation7 + $0x4] sm:$0x1] %vm30, %v161
    %s163 = sadd.s32 %s26, 17
    %s164 = sld [smem:[#allocation3 + %s163]]
    %s165 = scalar_lea.vmem [#allocation4], %s164
    %v166 = vld [vmem:[%s165] sm:$0x1]
    %168 = vrot.lane.b32.xlu0 %v166, 32
    %v169 = vpop.permute.xlu0 %168
    %171 = vst.msk [vmem:[#allocation7 + $0x4] sm:$0x1] %vm40, %v169
    %s172 = sadd.s32 %s26, 18
    %s173 = sld [smem:[#allocation3 + %s172]]
    %s174 = scalar_lea.vmem [#allocation4], %s173
    %v175 = vld [vmem:[%s174] sm:$0x1]
    %177 = vrot.lane.b32.xlu0 %v175, 64
    %v178 = vpop.permute.xlu0 %177
    %180 = vst.msk [vmem:[#allocation7 + $0x4] sm:$0x1] %vm50, %v178
    %s181 = sadd.s32 %s26, 19
    %s182 = sld [smem:[#allocation3 + %s181]]
    %s183 = scalar_lea.vmem [#allocation4], %s182
    %v184 = vld [vmem:[%s183] sm:$0x1]
    %186 = vrot.lane.b32.xlu0 %v184, 96
    %v187 = vpop.permute.xlu0 %186
    %189 = vst.msk [vmem:[#allocation7 + $0x4] sm:$0x1] %vm60, %v187
    %s190 = sadd.s32 %s26, 20
    %s191 = sld [smem:[#allocation3 + %s190]]
    %s192 = scalar_lea.vmem [#allocation4], %s191
    %v193 = vld [vmem:[%s192] sm:$0x1]
    %194 = vst.msk [vmem:[#allocation7 + $0x5] sm:$0x1] %vm30, %v193
    %s195 = sadd.s32 %s26, 21
    %s196 = sld [smem:[#allocation3 + %s195]]
    %s197 = scalar_lea.vmem [#allocation4], %s196
    %v198 = vld [vmem:[%s197] sm:$0x1]
    %200 = vrot.lane.b32.xlu0 %v198, 32
    %v201 = vpop.permute.xlu0 %200
    %203 = vst.msk [vmem:[#allocation7 + $0x5] sm:$0x1] %vm40, %v201
    %s204 = sadd.s32 %s26, 22
    %s205 = sld [smem:[#allocation3 + %s204]]
    %s206 = scalar_lea.vmem [#allocation4], %s205
    %v207 = vld [vmem:[%s206] sm:$0x1]
    %209 = vrot.lane.b32.xlu0 %v207, 64
    %v210 = vpop.permute.xlu0 %209
    %212 = vst.msk [vmem:[#allocation7 + $0x5] sm:$0x1] %vm50, %v210
    %s213 = sadd.s32 %s26, 23
    %s214 = sld [smem:[#allocation3 + %s213]]
    %s215 = scalar_lea.vmem [#allocation4], %s214
    %v216 = vld [vmem:[%s215] sm:$0x1]
    %218 = vrot.lane.b32.xlu0 %v216, 96
    %v219 = vpop.permute.xlu0 %218
    %221 = vst.msk [vmem:[#allocation7 + $0x5] sm:$0x1] %vm60, %v219
    %s222 = sadd.s32 %s26, 24
    %s223 = sld [smem:[#allocation3 + %s222]]
    %s224 = scalar_lea.vmem [#allocation4], %s223
    %v225 = vld [vmem:[%s224] sm:$0x1]
    %226 = vst.msk [vmem:[#allocation7 + $0x6] sm:$0x1] %vm30, %v225
    %s227 = sadd.s32 %s26, 25
    %s228 = sld [smem:[#allocation3 + %s227]]
    %s229 = scalar_lea.vmem [#allocation4], %s228
    %v230 = vld [vmem:[%s229] sm:$0x1]
    %232 = vrot.lane.b32.xlu0 %v230, 32
    %v233 = vpop.permute.xlu0 %232
    %235 = vst.msk [vmem:[#allocation7 + $0x6] sm:$0x1] %vm40, %v233
    %s236 = sadd.s32 %s26, 26
    %s237 = sld [smem:[#allocation3 + %s236]]
    %s238 = scalar_lea.vmem [#allocation4], %s237
    %v239 = vld [vmem:[%s238] sm:$0x1]
    %241 = vrot.lane.b32.xlu0 %v239, 64
    %v242 = vpop.permute.xlu0 %241
    %244 = vst.msk [vmem:[#allocation7 + $0x6] sm:$0x1] %vm50, %v242
    %s245 = sadd.s32 %s26, 27
    %s246 = sld [smem:[#allocation3 + %s245]]
    %s247 = scalar_lea.vmem [#allocation4], %s246
    %v248 = vld [vmem:[%s247] sm:$0x1]
    %250 = vrot.lane.b32.xlu0 %v248, 96
    %v251 = vpop.permute.xlu0 %250
    %253 = vst.msk [vmem:[#allocation7 + $0x6] sm:$0x1] %vm60, %v251
    %s254 = sadd.s32 %s26, 28
    %s255 = sld [smem:[#allocation3 + %s254]]
    %s256 = scalar_lea.vmem [#allocation4], %s255
    %v257 = vld [vmem:[%s256] sm:$0x1]
    %258 = vst.msk [vmem:[#allocation7 + $0x7] sm:$0x1] %vm30, %v257
    %s259 = sadd.s32 %s26, 29
    %s260 = sld [smem:[#allocation3 + %s259]]
    %s261 = scalar_lea.vmem [#allocation4], %s260
    %v262 = vld [vmem:[%s261] sm:$0x1]
    %264 = vrot.lane.b32.xlu0 %v262, 32
    %v265 = vpop.permute.xlu0 %264
    %267 = vst.msk [vmem:[#allocation7 + $0x7] sm:$0x1] %vm40, %v265
    %s268 = sadd.s32 %s26, 30
    %s269 = sld [smem:[#allocation3 + %s268]]
    %s270 = scalar_lea.vmem [#allocation4], %s269
    %v271 = vld [vmem:[%s270] sm:$0x1]
    %273 = vrot.lane.b32.xlu0 %v271, 64
    %v274 = vpop.permute.xlu0 %273
    %276 = vst.msk [vmem:[#allocation7 + $0x7] sm:$0x1] %vm50, %v274
    %s277 = sadd.s32 %s26, 31
    %s278 = sld [smem:[#allocation3 + %s277]]
    %s279 = scalar_lea.vmem [#allocation4], %s278
    %v280 = vld [vmem:[%s279] sm:$0x1]
    %282 = vrot.lane.b32.xlu0 %v280, 96
    %v283 = vpop.permute.xlu0 %282
    %285 = vst.msk [vmem:[#allocation7 + $0x7] sm:$0x1] %vm60, %v283
    // Predicated region
    $region10: #{tpu_custom_call.1} parent=1 // pred_check
      _
    $region11: #{tpu_custom_call.1} parent=1 // pred_check_branch
      %287 = sbr.rel (0) target = $region13
    $region12: #{tpu_custom_call.1} parent=1 // pred_region
      %s289 = ssub.s32 128, 128
      %290 = vsyncadd [#allocation6], %s289
      %s292 = sshll.u32 [#allocation7], 4
      %s293 = int_to_ptr.vmem [resolvable:$true] %s292
      %295 = dma.vmem_to_hbm [thread:$0]  %s293, 128, %s2, [#allocation6]
    $region13: #{tpu_custom_call.1} parent=1 // pred_fallthru
      _
    // Predicated region
    $region14: #{tpu_custom_call.1} parent=1 // pred_check
      _
    $region15: #{tpu_custom_call.1} parent=1 // pred_check_branch
      %297 = sbr.rel (0) target = $region17
    $region16: #{tpu_custom_call.1} parent=1 // pred_region
      %298 = dma.done [#allocation6], 128
    $region17: #{tpu_custom_call.1} parent=1 // pred_fallthru
      _
    %299 = vsyncpa [#allocation5], 1
    %300 = vsyncpa [#allocation6], 1

</llo_original>
